<compile_context>
chip_gen: v7x
topology: tpu7x:2x2x1
jax: 0.10.0
libtpu: 0.0.40
codegen_flags: <defaults>
</compile_context>

<pallas_src>
import functools

import jax
import jax.numpy as jnp
from jax import lax
from jax.experimental import pallas as pl
from jax.experimental.pallas import tpu as pltpu

EPS = 1e-5


# ------------------------------- kernel --------------------------------------
def _residual_block_kernel(img_rows,
                           x_ref, w1_ref, w2_ref, ws_ref,
                           b1_ref, b2_ref, bs_ref, out_ref):
    """One grid step: NB whole images, rows stacked as (NB*H, W*C)."""
    nrows = out_ref.shape[0]

    # Per-image first/last-row masks on an (nrows, 1) column; the broadcast to
    # 128 lanes happens inside jnp.where, keeping the int math off the wide
    # VPU path.  Power-of-two H uses a bitwise AND instead of a modulo.
    row = lax.broadcasted_iota(jnp.int32, (nrows, 1), 0)
    if img_rows & (img_rows - 1) == 0:
        rmod = jnp.bitwise_and(row, img_rows - 1)
    else:
        rmod = row % img_rows
    top = rmod == 0                                   # first row of each image
    bot = rmod == img_rows - 1                        # last row of each image

    x = x_ref[...]                                    # (NB*H, W*Cin) f32
    x_bf = x.astype(jnp.bfloat16)                     # feed the bf16-native MXU

    def conv3x3(inp_bf, w_ref, bias_ref):
        # w_ref[kh] is the banded, BN-folded (W*Cin_like, W*Cout) bf16 matrix
        # for kernel row kh (zero padding along W is baked into the band).
        y0 = jnp.dot(inp_bf, w_ref[0], preferred_element_type=jnp.float32)
        y1 = jnp.dot(inp_bf, w_ref[1], preferred_element_type=jnp.float32)
        y2 = jnp.dot(inp_bf, w_ref[2], preferred_element_type=jnp.float32)
        # kh=0 reads input row h-1 -> shift result DOWN one row; zero at image top.
        acc = y1 + jnp.where(top, 0.0, pltpu.roll(y0, shift=1, axis=0))
        # kh=2 reads input row h+1 -> shift result UP one row; pltpu.roll needs a
        # non-negative shift, so use the equivalent cyclic shift of nrows-1.
        acc = acc + jnp.where(bot, 0.0, pltpu.roll(y2, shift=nrows - 1, axis=0))
        return acc + bias_ref[...]                    # bias is (1, W*Cout) f32

    h1 = jnp.maximum(conv3x3(x_bf, w1_ref, b1_ref), 0.0)       # conv1 + BN1 + ReLU
    h2 = conv3x3(h1.astype(jnp.bfloat16), w2_ref, b2_ref)      # conv2 + BN2
    sc = jnp.dot(x_bf, ws_ref[...],                            # 1x1 shortcut + BN
                 preferred_element_type=jnp.float32) + bs_ref[...]
    out_ref[...] = jnp.maximum(h2 + sc, 0.0).astype(out_ref.dtype)


# --------------------------- host-side weight prep ----------------------------
def _fold_bn(gamma, beta, mean, var):
    scale = gamma / jnp.sqrt(var + EPS)
    bias = beta - mean * scale
    return scale.astype(jnp.float32), bias.astype(jnp.float32)


def _band_conv_weights(w_hwio, width):
    """(3,3,Cin,Cout) HWIO -> (3, width*Cin, width*Cout) banded matrices.

    band[kh, v*Cin+ci, w*Cout+co] = w[kh, v-w+1, ci, co] if |v-w|<=1 else 0,
    so  x_row(width*Cin) @ band[kh]  ==  a 1x3 conv along W with zero padding.
    """
    kh, kw, cin, cout = w_hwio.shape
    v = jnp.arange(width)[:, None, None]
    o = jnp.arange(width)[None, :, None]
    k = jnp.arange(kw)[None, None, :]
    sel = (v - o + 1 == k).astype(jnp.float32)            # (W, W, 3)
    band = jnp.einsum("vok,hkic->hvioc", sel, w_hwio.astype(jnp.float32))
    return band.reshape(kh, width * cin, width * cout)


def _blockdiag_weights(w_io, width):
    """(Cin,Cout) 1x1-conv weight -> (width*Cin, width*Cout) block-diagonal."""
    cin, cout = w_io.shape
    eye = jnp.eye(width, dtype=jnp.float32)
    blk = jnp.einsum("vo,ic->vioc", eye, w_io.astype(jnp.float32))
    return blk.reshape(width * cin, width * cout)


def _auto_images_per_step(n, h, target_rows=512):
    """Largest NB dividing n with NB*h <= target_rows; keep grid >= 2 (v7x
    megacore split) when that still leaves >= 256 rows per step."""
    nb = 1
    for cand in range(1, n + 1):
        if n % cand == 0 and cand * h <= target_rows:
            nb = cand
    if n // nb == 1 and nb % 2 == 0 and (nb // 2) * h >= 256:
        nb //= 2
    return nb


# -------------------------------- wrapper -------------------------------------
def residual_block(x, params, *, images_per_step=None):
    """x: (N, H, W, Cin) float32  ->  (N, H, W, Cout) float32 (stride=1 block)."""
    N, H, W, Cin = x.shape
    Cout = params["w1"].shape[-1]
    NB = images_per_step if images_per_step is not None else _auto_images_per_step(N, H)
    assert N % NB == 0, "images_per_step must divide the batch"

    # Fold BN scale into the conv weights; keep bias as a tiled lane vector.
    s1, b1 = _fold_bn(*params["bn1"])
    s2, b2 = _fold_bn(*params["bn2"])
    ss, bsh = _fold_bn(*params["bns"])

    # bf16 weights feed the bf16-native MXU; accumulation stays f32 in-kernel.
    w1b = _band_conv_weights(params["w1"] * s1, W).astype(jnp.bfloat16)
    w2b = _band_conv_weights(params["w2"] * s2, W).astype(jnp.bfloat16)
    wsb = _blockdiag_weights(params["ws"] * ss, W).astype(jnp.bfloat16)
    bias1 = jnp.tile(b1, W)[None, :]                      # (1, W*Cout) f32
    bias2 = jnp.tile(b2, W)[None, :]
    biass = jnp.tile(bsh, W)[None, :]

    # Lane-dense activation layout: (N*H, W*C) — a free reshape of NHWC.
    x2d = x.reshape(N * H, W * Cin)

    rows_per_step = NB * H
    lanes_in, lanes_out = W * Cin, W * Cout

    # FLOPs actually executed by the banded / block-diagonal matmuls.
    flops = 2 * N * H * (3 * lanes_in * lanes_out
                         + 3 * lanes_out * lanes_out
                         + lanes_in * lanes_out)
    bytes_accessed = (4 * x2d.size + 4 * N * H * lanes_out
                      + 2 * (w1b.size + w2b.size + wsb.size)
                      + 4 * 3 * lanes_out)

    # Explicit scoped-VMEM limit with headroom (double-buffered acts + weights).
    vmem_bytes = (2 * 4 * rows_per_step * (lanes_in + lanes_out)
                  + 2 * 2 * (w1b.size + w2b.size + wsb.size)
                  + 2 * 4 * 3 * lanes_out)
    vmem_limit = int(min(max(2 * vmem_bytes, 32 * 1024 * 1024), 64 * 1024 * 1024))

    out2d = pl.pallas_call(
        functools.partial(_residual_block_kernel, H),
        out_shape=jax.ShapeDtypeStruct((N * H, lanes_out), jnp.float32),
        grid_spec=pltpu.PrefetchScalarGridSpec(
            num_scalar_prefetch=0,
            grid=(N // NB,),
            in_specs=[
                pl.BlockSpec((rows_per_step, lanes_in), lambda n: (n, 0)),
                pl.BlockSpec((3, lanes_in, lanes_out), lambda n: (0, 0, 0)),
                pl.BlockSpec((3, lanes_out, lanes_out), lambda n: (0, 0, 0)),
                pl.BlockSpec((lanes_in, lanes_out), lambda n: (0, 0)),
                pl.BlockSpec((1, lanes_out), lambda n: (0, 0)),
                pl.BlockSpec((1, lanes_out), lambda n: (0, 0)),
                pl.BlockSpec((1, lanes_out), lambda n: (0, 0)),
            ],
            out_specs=pl.BlockSpec((rows_per_step, lanes_out), lambda n: (n, 0)),
        ),
        compiler_params=pltpu.CompilerParams(
            dimension_semantics=("parallel",),            # v7x: 2 TCs split batch
            vmem_limit_bytes=vmem_limit),
        cost_estimate=pl.CostEstimate(
            flops=flops, transcendentals=0, bytes_accessed=bytes_accessed),
    )(x2d, w1b, w2b, wsb, bias1, bias2, biass)

    return out2d.reshape(N, H, W, Cout)


# ---------------------------- pure-JAX reference ------------------------------
def _reference(x, params):
    def conv(inp, w, pad):
        return lax.conv_general_dilated(
            inp, w, (1, 1), [(pad, pad), (pad, pad)],
            dimension_numbers=("NHWC", "HWIO", "NHWC"))

    def bn(inp, stats):
        gamma, beta, mean, var = stats
        return (inp - mean) / jnp.sqrt(var + EPS) * gamma + beta

    out = jax.nn.relu(bn(conv(x, params["w1"], 1), params["bn1"]))
    out = bn(conv(out, params["w2"], 1), params["bn2"])
    sc = bn(conv(x, params["ws"][None, None], 0), params["bns"])
    return jax.nn.relu(out + sc)


def _make_bn_params(key, c):
    k1, k2, k3, k4 = jax.random.split(key, 4)
    gamma = jax.random.uniform(k1, (c,), jnp.float32, 0.5, 1.5)
    beta = jax.random.normal(k2, (c,), jnp.float32) * 0.1
    mean = jax.random.normal(k3, (c,), jnp.float32) * 0.1
    var = jax.random.uniform(k4, (c,), jnp.float32, 0.5, 1.5)
    return gamma, beta, mean, var


if __name__ == "__main__":
    N, H, W = 2, 16, 16
    Cin, Cout = 4, 8                      # Cin != Cout -> conv shortcut branch

    key = jax.random.PRNGKey(0)
    k = jax.random.split(key, 8)

    params = {
        "w1": jax.random.normal(k[0], (3, 3, Cin, Cout), jnp.float32) * 0.2,
        "w2": jax.random.normal(k[1], (3, 3, Cout, Cout), jnp.float32) * 0.2,
        "ws": jax.random.normal(k[2], (Cin, Cout), jnp.float32) * 0.2,
        "bn1": _make_bn_params(k[3], Cout),
        "bn2": _make_bn_params(k[4], Cout),
        "bns": _make_bn_params(k[5], Cout),
    }

    x = jax.random.normal(k[6], (N, H, W, Cin), jnp.float32)

    out = jax.block_until_ready(residual_block(x, params))
    ref = jax.block_until_ready(_reference(x, params))

    assert out.shape == (N, H, W, Cout), out.shape
    err = float(jnp.max(jnp.abs(out - ref)))
    # bf16 MXU inputs -> loosened tolerance vs. the f32 reference.
    assert jnp.allclose(out, ref, atol=1.5e-1, rtol=1e-1), err

    print("KERNEL_OK")
</pallas_src>

<mosaic_0001>
module attributes {stable_mosaic.version = 11 : i64} {
  func.func @_residual_block_kernel(%arg0: i32, %arg1: memref<32x64xf32, #tpu.memory_space<vmem>>, %arg2: memref<3x64x128xbf16, #tpu.memory_space<vmem>>, %arg3: memref<3x128x128xbf16, #tpu.memory_space<vmem>>, %arg4: memref<64x128xbf16, #tpu.memory_space<vmem>>, %arg5: memref<1x128xf32, #tpu.memory_space<vmem>>, %arg6: memref<1x128xf32, #tpu.memory_space<vmem>>, %arg7: memref<1x128xf32, #tpu.memory_space<vmem>>, %arg8: memref<32x128xf32, #tpu.memory_space<vmem>>) attributes {dimension_semantics = [#tpu.dimension_semantics<parallel>], iteration_bounds = array<i64: 1>, scalar_prefetch = 0 : i64, scratch_operands = 0 : i64, tpu.core_type = #tpu.core_type<tc>, window_params = [{transform_indices = @transform_0, window_bounds = array<i64: 32, 64>}, {pipeline_mode = #tpu.pipeline_mode<synchronous>, transform_indices = @transform_1, window_bounds = array<i64: 3, 64, 128>}, {pipeline_mode = #tpu.pipeline_mode<synchronous>, transform_indices = @transform_2, window_bounds = array<i64: 3, 128, 128>}, {pipeline_mode = #tpu.pipeline_mode<synchronous>, transform_indices = @transform_3, window_bounds = array<i64: 64, 128>}, {pipeline_mode = #tpu.pipeline_mode<synchronous>, transform_indices = @transform_4, window_bounds = array<i64: 1, 128>}, {pipeline_mode = #tpu.pipeline_mode<synchronous>, transform_indices = @transform_5, window_bounds = array<i64: 1, 128>}, {pipeline_mode = #tpu.pipeline_mode<synchronous>, transform_indices = @transform_6, window_bounds = array<i64: 1, 128>}, {transform_indices = @transform_7, window_bounds = array<i64: 32, 128>}]} {
    %0 = tpu.iota {dimensions = array<i32: 0>} : vector<32x1xi32>
    %c15_i32 = arith.constant 15 : i32
    %1 = vector.broadcast %c15_i32 : i32 to vector<32x1xi32>
    %2 = arith.andi %0, %1 : vector<32x1xi32>
    %c0_i32 = arith.constant 0 : i32
    %3 = vector.broadcast %c0_i32 : i32 to vector<32x1xi32>
    %4 = arith.cmpi eq, %2, %3 : vector<32x1xi32>
    %c15_i32_0 = arith.constant 15 : i32
    %5 = vector.broadcast %c15_i32_0 : i32 to vector<32x1xi32>
    %6 = arith.cmpi eq, %2, %5 : vector<32x1xi32>
    %c0 = arith.constant 0 : index
    %c0_1 = arith.constant 0 : index
    %7 = vector.load %arg1[%c0, %c0_1] : memref<32x64xf32, #tpu.memory_space<vmem>>, vector<32x64xf32>
    %8 = arith.truncf %7 : vector<32x64xf32> to vector<32x64xbf16>
    %c0_2 = arith.constant 0 : index
    %c0_3 = arith.constant 0 : index
    %c0_4 = arith.constant 0 : index
    %9 = vector.load %arg2[%c0_2, %c0_3, %c0_4] : memref<3x64x128xbf16, #tpu.memory_space<vmem>>, vector<1x64x128xbf16>
    %10 = vector.shape_cast %9 : vector<1x64x128xbf16> to vector<64x128xbf16>
    %cst = arith.constant dense<0.000000e+00> : vector<32x128xf32>
    %11 = tpu.matmul %8, %10, %cst {dimension_numbers = #tpu.dot_dimension_numbers<[1], [0], [0], [1], [0, 0, 1, 1], [], []>} : vector<32x64xbf16>, vector<64x128xbf16>, vector<32x128xf32> -> vector<32x128xf32>
    %c1 = arith.constant 1 : index
    %c0_5 = arith.constant 0 : index
    %c0_6 = arith.constant 0 : index
    %12 = vector.load %arg2[%c1, %c0_5, %c0_6] : memref<3x64x128xbf16, #tpu.memory_space<vmem>>, vector<1x64x128xbf16>
    %13 = vector.shape_cast %12 : vector<1x64x128xbf16> to vector<64x128xbf16>
    %cst_7 = arith.constant dense<0.000000e+00> : vector<32x128xf32>
    %14 = tpu.matmul %8, %13, %cst_7 {dimension_numbers = #tpu.dot_dimension_numbers<[1], [0], [0], [1], [0, 0, 1, 1], [], []>} : vector<32x64xbf16>, vector<64x128xbf16>, vector<32x128xf32> -> vector<32x128xf32>
    %c2 = arith.constant 2 : index
    %c0_8 = arith.constant 0 : index
    %c0_9 = arith.constant 0 : index
    %15 = vector.load %arg2[%c2, %c0_8, %c0_9] : memref<3x64x128xbf16, #tpu.memory_space<vmem>>, vector<1x64x128xbf16>
    %16 = vector.shape_cast %15 : vector<1x64x128xbf16> to vector<64x128xbf16>
    %cst_10 = arith.constant dense<0.000000e+00> : vector<32x128xf32>
    %17 = tpu.matmul %8, %16, %cst_10 {dimension_numbers = #tpu.dot_dimension_numbers<[1], [0], [0], [1], [0, 0, 1, 1], [], []>} : vector<32x64xbf16>, vector<64x128xbf16>, vector<32x128xf32> -> vector<32x128xf32>
    %c1_i32 = arith.constant 1 : i32
    %18 = tpu.dynamic_rotate %11 by %c1_i32 dim 0 : vector<32x128xf32>, i32 -> vector<32x128xf32>
    %cst_11 = arith.constant 0.000000e+00 : f32
    %19 = vector.shape_cast %4 : vector<32x1xi1> to vector<32x1xi1>
    %20 = vector.broadcast %19 : vector<32x1xi1> to vector<32x128xi1>
    %21 = vector.broadcast %cst_11 : f32 to vector<32x128xf32>
    %22 = arith.select %20, %21, %18 : vector<32x128xi1>, vector<32x128xf32>
    %23 = arith.addf %14, %22 : vector<32x128xf32>
    %c31_i32 = arith.constant 31 : i32
    %24 = tpu.dynamic_rotate %17 by %c31_i32 dim 0 : vector<32x128xf32>, i32 -> vector<32x128xf32>
    %cst_12 = arith.constant 0.000000e+00 : f32
    %25 = vector.shape_cast %6 : vector<32x1xi1> to vector<32x1xi1>
    %26 = vector.broadcast %25 : vector<32x1xi1> to vector<32x128xi1>
    %27 = vector.broadcast %cst_12 : f32 to vector<32x128xf32>
    %28 = arith.select %26, %27, %24 : vector<32x128xi1>, vector<32x128xf32>
    %29 = arith.addf %23, %28 : vector<32x128xf32>
    %c0_13 = arith.constant 0 : index
    %c0_14 = arith.constant 0 : index
    %30 = vector.load %arg5[%c0_13, %c0_14] : memref<1x128xf32, #tpu.memory_space<vmem>>, vector<1x128xf32>
    %31 = vector.broadcast %30 : vector<1x128xf32> to vector<32x128xf32>
    %32 = arith.addf %29, %31 : vector<32x128xf32>
    %cst_15 = arith.constant 0.000000e+00 : f32
    %33 = vector.broadcast %cst_15 : f32 to vector<32x128xf32>
    %34 = arith.maximumf %32, %33 : vector<32x128xf32>
    %35 = arith.truncf %34 : vector<32x128xf32> to vector<32x128xbf16>
    %c0_16 = arith.constant 0 : index
    %c0_17 = arith.constant 0 : index
    %c0_18 = arith.constant 0 : index
    %36 = vector.load %arg3[%c0_16, %c0_17, %c0_18] : memref<3x128x128xbf16, #tpu.memory_space<vmem>>, vector<1x128x128xbf16>
    %37 = vector.shape_cast %36 : vector<1x128x128xbf16> to vector<128x128xbf16>
    %cst_19 = arith.constant dense<0.000000e+00> : vector<32x128xf32>
    %38 = tpu.matmul %35, %37, %cst_19 {dimension_numbers = #tpu.dot_dimension_numbers<[1], [0], [0], [1], [0, 0, 1, 1], [], []>} : vector<32x128xbf16>, vector<128x128xbf16>, vector<32x128xf32> -> vector<32x128xf32>
    %c1_20 = arith.constant 1 : index
    %c0_21 = arith.constant 0 : index
    %c0_22 = arith.constant 0 : index
    %39 = vector.load %arg3[%c1_20, %c0_21, %c0_22] : memref<3x128x128xbf16, #tpu.memory_space<vmem>>, vector<1x128x128xbf16>
    %40 = vector.shape_cast %39 : vector<1x128x128xbf16> to vector<128x128xbf16>
    %cst_23 = arith.constant dense<0.000000e+00> : vector<32x128xf32>
    %41 = tpu.matmul %35, %40, %cst_23 {dimension_numbers = #tpu.dot_dimension_numbers<[1], [0], [0], [1], [0, 0, 1, 1], [], []>} : vector<32x128xbf16>, vector<128x128xbf16>, vector<32x128xf32> -> vector<32x128xf32>
    %c2_24 = arith.constant 2 : index
    %c0_25 = arith.constant 0 : index
    %c0_26 = arith.constant 0 : index
    %42 = vector.load %arg3[%c2_24, %c0_25, %c0_26] : memref<3x128x128xbf16, #tpu.memory_space<vmem>>, vector<1x128x128xbf16>
    %43 = vector.shape_cast %42 : vector<1x128x128xbf16> to vector<128x128xbf16>
    %cst_27 = arith.constant dense<0.000000e+00> : vector<32x128xf32>
    %44 = tpu.matmul %35, %43, %cst_27 {dimension_numbers = #tpu.dot_dimension_numbers<[1], [0], [0], [1], [0, 0, 1, 1], [], []>} : vector<32x128xbf16>, vector<128x128xbf16>, vector<32x128xf32> -> vector<32x128xf32>
    %c1_i32_28 = arith.constant 1 : i32
    %45 = tpu.dynamic_rotate %38 by %c1_i32_28 dim 0 : vector<32x128xf32>, i32 -> vector<32x128xf32>
    %cst_29 = arith.constant 0.000000e+00 : f32
    %46 = vector.shape_cast %4 : vector<32x1xi1> to vector<32x1xi1>
    %47 = vector.broadcast %46 : vector<32x1xi1> to vector<32x128xi1>
    %48 = vector.broadcast %cst_29 : f32 to vector<32x128xf32>
    %49 = arith.select %47, %48, %45 : vector<32x128xi1>, vector<32x128xf32>
    %50 = arith.addf %41, %49 : vector<32x128xf32>
    %c31_i32_30 = arith.constant 31 : i32
    %51 = tpu.dynamic_rotate %44 by %c31_i32_30 dim 0 : vector<32x128xf32>, i32 -> vector<32x128xf32>
    %cst_31 = arith.constant 0.000000e+00 : f32
    %52 = vector.shape_cast %6 : vector<32x1xi1> to vector<32x1xi1>
    %53 = vector.broadcast %52 : vector<32x1xi1> to vector<32x128xi1>
    %54 = vector.broadcast %cst_31 : f32 to vector<32x128xf32>
    %55 = arith.select %53, %54, %51 : vector<32x128xi1>, vector<32x128xf32>
    %56 = arith.addf %50, %55 : vector<32x128xf32>
    %c0_32 = arith.constant 0 : index
    %c0_33 = arith.constant 0 : index
    %57 = vector.load %arg6[%c0_32, %c0_33] : memref<1x128xf32, #tpu.memory_space<vmem>>, vector<1x128xf32>
    %58 = vector.broadcast %57 : vector<1x128xf32> to vector<32x128xf32>
    %59 = arith.addf %56, %58 : vector<32x128xf32>
    %c0_34 = arith.constant 0 : index
    %c0_35 = arith.constant 0 : index
    %60 = vector.load %arg4[%c0_34, %c0_35] : memref<64x128xbf16, #tpu.memory_space<vmem>>, vector<64x128xbf16>
    %cst_36 = arith.constant dense<0.000000e+00> : vector<32x128xf32>
    %61 = tpu.matmul %8, %60, %cst_36 {dimension_numbers = #tpu.dot_dimension_numbers<[1], [0], [0], [1], [0, 0, 1, 1], [], []>} : vector<32x64xbf16>, vector<64x128xbf16>, vector<32x128xf32> -> vector<32x128xf32>
    %c0_37 = arith.constant 0 : index
    %c0_38 = arith.constant 0 : index
    %62 = vector.load %arg7[%c0_37, %c0_38] : memref<1x128xf32, #tpu.memory_space<vmem>>, vector<1x128xf32>
    %63 = vector.broadcast %62 : vector<1x128xf32> to vector<32x128xf32>
    %64 = arith.addf %61, %63 : vector<32x128xf32>
    %65 = arith.addf %59, %64 : vector<32x128xf32>
    %cst_39 = arith.constant 0.000000e+00 : f32
    %66 = vector.broadcast %cst_39 : f32 to vector<32x128xf32>
    %67 = arith.maximumf %65, %66 : vector<32x128xf32>
    %c0_40 = arith.constant 0 : index
    %c0_41 = arith.constant 0 : index
    %68 = vector.load %arg8[%c0_40, %c0_41] : memref<32x128xf32, #tpu.memory_space<vmem>>, vector<32x128xf32>
    tpu.vector_store %arg8[%c0_40, %c0_41], %67 {strides = array<i32>} : memref<32x128xf32, #tpu.memory_space<vmem>>, vector<32x128xf32>,
    return
  }
  func.func @transform_0(%arg0: i32) -> (i32, i32) {
    %c0_i32 = arith.constant 0 : i32
    %c0_i32_0 = arith.constant 0 : i32
    return %arg0, %c0_i32 : i32, i32
  }
  func.func @transform_1(%arg0: i32) -> (i32, i32, i32) {
    %c0_i32 = arith.constant 0 : i32
    %c0_i32_0 = arith.constant 0 : i32
    %c0_i32_1 = arith.constant 0 : i32
    %c0_i32_2 = arith.constant 0 : i32
    return %c0_i32, %c0_i32_0, %c0_i32_1 : i32, i32, i32
  }
  func.func @transform_2(%arg0: i32) -> (i32, i32, i32) {
    %c0_i32 = arith.constant 0 : i32
    %c0_i32_0 = arith.constant 0 : i32
    %c0_i32_1 = arith.constant 0 : i32
    %c0_i32_2 = arith.constant 0 : i32
    return %c0_i32, %c0_i32_0, %c0_i32_1 : i32, i32, i32
  }
  func.func @transform_3(%arg0: i32) -> (i32, i32) {
    %c0_i32 = arith.constant 0 : i32
    %c0_i32_0 = arith.constant 0 : i32
    %c0_i32_1 = arith.constant 0 : i32
    return %c0_i32, %c0_i32_0 : i32, i32
  }
  func.func @transform_4(%arg0: i32) -> (i32, i32) {
    %c0_i32 = arith.constant 0 : i32
    %c0_i32_0 = arith.constant 0 : i32
    %c0_i32_1 = arith.constant 0 : i32
    return %c0_i32, %c0_i32_0 : i32, i32
  }
  func.func @transform_5(%arg0: i32) -> (i32, i32) {
    %c0_i32 = arith.constant 0 : i32
    %c0_i32_0 = arith.constant 0 : i32
    %c0_i32_1 = arith.constant 0 : i32
    return %c0_i32, %c0_i32_0 : i32, i32
  }
  func.func @transform_6(%arg0: i32) -> (i32, i32) {
    %c0_i32 = arith.constant 0 : i32
    %c0_i32_0 = arith.constant 0 : i32
    %c0_i32_1 = arith.constant 0 : i32
    return %c0_i32, %c0_i32_0 : i32, i32
  }
  func.func @transform_7(%arg0: i32) -> (i32, i32) {
    %c0_i32 = arith.constant 0 : i32
    %c0_i32_0 = arith.constant 0 : i32
    return %arg0, %c0_i32 : i32, i32
  }
}

</mosaic_0001>

<llo_original>
// kernel: tpu_custom_call.1
$region0: #{tpu_custom_call.1}
  #allocation0 [shape = 'u32[]', space=smem, size = 0x4, offset = 0x4, fixed_abs, tag = 'smem constant byte address 0x4 - core index']
  #allocation1 [shape = 'u32[144,128]{1,0:T(1,128)}', space=vmem, size = 0x12000, scoped, tag = 'internal scratch']
  %s0 = inlined_call_operand.hbm [shape: f32[32,64], index: 0, kind: input, shape index: {}]
  %s1 = inlined_call_operand.hbm [shape: bf16[3,64,128], index: 1, kind: input, shape index: {}]
  %s2 = inlined_call_operand.hbm [shape: bf16[3,128,128], index: 2, kind: input, shape index: {}]
  %s3 = inlined_call_operand.hbm [shape: bf16[64,128], index: 3, kind: input, shape index: {}]
  %s4 = inlined_call_operand.vmem [shape: f32[1,128], index: 4, kind: input, shape index: {}]
  %s5 = inlined_call_operand.vmem [shape: f32[1,128], index: 5, kind: input, shape index: {}]
  %s6 = inlined_call_operand.vmem [shape: f32[1,128], index: 6, kind: input, shape index: {}]
  %s7 = inlined_call_operand.hbm [shape: f32[32,128], index: 7, kind: output, shape index: {}]
  %s8 = sld [smem:[#allocation0]]
  $region54: #{tpu_custom_call.1} parent=0
    _
  %s10 = ssub.s32 1, %s8
  %s11 = scalar_select 0, %s10, %s8
  $region1: #{tpu_custom_call.1} parent=0
    #allocation2 [shape = 'u8[16384]{0}', space=vmem, size = 0x4000, scoped, tag = 'input window, operand 0, single buffered']
    #allocation3 [shape = 's32[1]{0}', space=sflag, size = 0x4, scoped, tag = 'scoped memory for tpu_custom_call.1']
    #allocation4 [shape = 's32[1]{0}', space=sflag, size = 0x4, scoped, tag = 'scoped memory for tpu_custom_call.1']
    #allocation5 [shape = 'u8[49152]{0}', space=vmem, size = 0xc000, scoped, tag = 'input window, operand 1, single buffered']
    #allocation6 [shape = 's32[1]{0}', space=sflag, size = 0x4, scoped, tag = 'scoped memory for tpu_custom_call.1']
    #allocation7 [shape = 'u8[98304]{0}', space=vmem, size = 0x18000, scoped, tag = 'input window, operand 2, single buffered']
    #allocation8 [shape = 'u8[16384]{0}', space=vmem, size = 0x4000, scoped, tag = 'input window, operand 3, single buffered']
    #allocation9 [shape = 's32[1]{0}', space=sflag, size = 0x4, scoped, tag = 'scoped memory for tpu_custom_call.1']
    #allocation10 [shape = 'u8[16384]{0}', space=vmem, size = 0x4000, scoped, tag = 'output window, operand 0, single buffered']
    %12 = vsyncpa [#allocation3], 0
    %13 = vsyncpa [#allocation6], 0
    %14 = vsyncpa [#allocation9], 0
    %15 = vsyncpa [#allocation4], 0
    // Predicated region
    $region2: #{tpu_custom_call.1} parent=1 // pred_check
      _
    $region3: #{tpu_custom_call.1} parent=1 // pred_check_branch
      %17 = sbr.rel (0) target = $region5
    $region4: #{tpu_custom_call.1} parent=1 // pred_region
      %s19 = ssub.s32 512, 512
      %20 = vsyncadd [#allocation3], %s19
      %s21 = sshll.u32 [#allocation2], 4
      %s22 = int_to_ptr.vmem [resolvable:$true] %s21
      %27 = dma.hbm_to_vmem [thread:$0]  %s0, 512, %s22, [#allocation3], 128, 128, 8
    $region5: #{tpu_custom_call.1} parent=1 // pred_fallthru
      _
    // Predicated region
    $region6: #{tpu_custom_call.1} parent=1 // pred_check
      _
    $region7: #{tpu_custom_call.1} parent=1 // pred_check_branch
      %29 = sbr.rel (0) target = $region9
    $region8: #{tpu_custom_call.1} parent=1 // pred_region
      %s31 = ssub.s32 1536, 1536
      %32 = vsyncadd [#allocation6], %s31
      %s33 = sshll.u32 [#allocation5], 4
      %s34 = int_to_ptr.vmem [resolvable:$true] %s33
      %39 = dma.hbm_to_vmem [thread:$0]  %s1, 1536, %s34, [#allocation6], 64, 64, 4
    $region9: #{tpu_custom_call.1} parent=1 // pred_fallthru
      _
    // Predicated region
    $region10: #{tpu_custom_call.1} parent=1 // pred_check
      _
    $region11: #{tpu_custom_call.1} parent=1 // pred_check_branch
      %41 = sbr.rel (0) target = $region13
    $region12: #{tpu_custom_call.1} parent=1 // pred_region
      %s43 = ssub.s32 3072, 3072
      %44 = vsyncadd [#allocation6], %s43
      %s45 = sshll.u32 [#allocation7], 4
      %s46 = int_to_ptr.vmem [resolvable:$true] %s45
      %51 = dma.hbm_to_vmem [thread:$0]  %s2, 3072, %s46, [#allocation6], 64, 64, 4
    $region13: #{tpu_custom_call.1} parent=1 // pred_fallthru
      _
    // Predicated region
    $region14: #{tpu_custom_call.1} parent=1 // pred_check
      _
    $region15: #{tpu_custom_call.1} parent=1 // pred_check_branch
      %53 = sbr.rel (0) target = $region17
    $region16: #{tpu_custom_call.1} parent=1 // pred_region
      %s55 = ssub.s32 512, 512
      %56 = vsyncadd [#allocation9], %s55
      %s57 = sshll.u32 [#allocation8], 4
      %s58 = int_to_ptr.vmem [resolvable:$true] %s57
      %63 = dma.hbm_to_vmem [thread:$0]  %s3, 512, %s58, [#allocation9], 64, 64, 4
    $region17: #{tpu_custom_call.1} parent=1 // pred_fallthru
      _
    // Predicated region
    $region18: #{tpu_custom_call.1} parent=1 // pred_check
      _
    $region19: #{tpu_custom_call.1} parent=1 // pred_check_branch
      %65 = sbr.rel (0) target = $region21
    $region20: #{tpu_custom_call.1} parent=1 // pred_region
      _
    $region21: #{tpu_custom_call.1} parent=1 // pred_fallthru
      _
    // Predicated region
    $region22: #{tpu_custom_call.1} parent=1 // pred_check
      _
    $region23: #{tpu_custom_call.1} parent=1 // pred_check_branch
      %67 = sbr.rel (0) target = $region25
    $region24: #{tpu_custom_call.1} parent=1 // pred_region
      _
    $region25: #{tpu_custom_call.1} parent=1 // pred_fallthru
      _
    // Predicated region
    $region26: #{tpu_custom_call.1} parent=1 // pred_check
      _
    $region27: #{tpu_custom_call.1} parent=1 // pred_check_branch
      %69 = sbr.rel (0) target = $region29
    $region28: #{tpu_custom_call.1} parent=1 // pred_region
      _
    $region29: #{tpu_custom_call.1} parent=1 // pred_fallthru
      _
    // Predicated region
    $region30: #{tpu_custom_call.1} parent=1 // pred_check
      _
    $region31: #{tpu_custom_call.1} parent=1 // pred_check_branch
      %71 = sbr.rel (0) target = $region33
    $region32: #{tpu_custom_call.1} parent=1 // pred_region
      %72 = dma.done [#allocation3], 512
    $region33: #{tpu_custom_call.1} parent=1 // pred_fallthru
      _
    // Predicated region
    $region34: #{tpu_custom_call.1} parent=1 // pred_check
      _
    $region35: #{tpu_custom_call.1} parent=1 // pred_check_branch
      %74 = sbr.rel (0) target = $region37
    $region36: #{tpu_custom_call.1} parent=1 // pred_region
      %75 = dma.done [#allocation6], 1536
    $region37: #{tpu_custom_call.1} parent=1 // pred_fallthru
      _
    // Predicated region
    $region38: #{tpu_custom_call.1} parent=1 // pred_check
      _
    $region39: #{tpu_custom_call.1} parent=1 // pred_check_branch
      %77 = sbr.rel (0) target = $region41
    $region40: #{tpu_custom_call.1} parent=1 // pred_region
      %78 = dma.done [#allocation6], 3072
    $region41: #{tpu_custom_call.1} parent=1 // pred_fallthru
      _
    // Predicated region
    $region42: #{tpu_custom_call.1} parent=1 // pred_check
      _
    $region43: #{tpu_custom_call.1} parent=1 // pred_check_branch
      %80 = sbr.rel (0) target = $region45
    $region44: #{tpu_custom_call.1} parent=1 // pred_region
      %81 = dma.done [#allocation9], 512
    $region45: #{tpu_custom_call.1} parent=1 // pred_fallthru
      _
    %v83 = vlaneseq
    %v84 = vshrl.u32 %v83, 7
    %v85 = vadd.s32 %v84, 8
    %v86 = vadd.s32 %v84, 16
    %v87 = vadd.s32 %v84, 24
    %v88 = vand.u32 %v84, 15
    %v89 = vand.u32 %v85, 15
    %v90 = vand.u32 %v86, 15
    %v91 = vand.u32 %v87, 15
    %vm92 = vcmp.eq.s32.totalorder %v88, 0
    %vm93 = vcmp.eq.s32.totalorder %v89, 0
    %vm94 = vcmp.eq.s32.totalorder %v90, 0
    %vm95 = vcmp.eq.s32.totalorder %v91, 0
    %vm96 = vcmp.eq.s32.totalorder %v88, 15
    %vm97 = vcmp.eq.s32.totalorder %v89, 15
    %vm98 = vcmp.eq.s32.totalorder %v90, 15
    %vm99 = vcmp.eq.s32.totalorder %v91, 15
    %v100 = vld [vmem:[#allocation2] sm:$0xff]
    %v101 = vld [vmem:[#allocation2 + $0x8] sm:$0xff]
    %v102 = vld [vmem:[#allocation2 + $0x10] sm:$0xff]
    %v103 = vld [vmem:[#allocation2 + $0x18] sm:$0xff]
    %v104 = vpack.c.bf16 %v101, %v100
    %v105 = vpack.c.bf16 %v103, %v102
    %v106 = vld [vmem:[#allocation5] sm:$0xf]
    %v107 = vld [vmem:[#allocation5 + $0x4] sm:$0xf]
    %v108 = vld [vmem:[#allocation5 + $0x8] sm:$0xf]
    %v109 = vld [vmem:[#allocation5 + $0xc] sm:$0xf]
    %v110 = vld [vmem:[#allocation5 + $0x10] sm:$0xf]
    %v111 = vld [vmem:[#allocation5 + $0x14] sm:$0xf]
    %v112 = vld [vmem:[#allocation5 + $0x18] sm:$0xf]
    %v113 = vld [vmem:[#allocation5 + $0x1c] sm:$0xf]
    %v122 = vunpack.c.l.b16 %v106
    %v123 = vunpack.c.l.b16 %v107
    %v124 = vunpack.c.l.b16 %v108
    %v125 = vunpack.c.l.b16 %v109
    %v126 = vunpack.c.l.b16 %v110
    %v127 = vunpack.c.l.b16 %v111
    %v128 = vunpack.c.l.b16 %v112
    %v129 = vunpack.c.l.b16 %v113
    %v130 = vpack.c.b16 %v123, %v122
    %v131 = vpack.c.b16 %v125, %v124
    %v132 = vpack.c.b16 %v127, %v126
    %v133 = vpack.c.b16 %v129, %v128
    %vm138 = vcmask 523264
    %v140 = vsel %vm138, %v104, 0
    %v143 = vsel %vm138, %v105, 0
    %145 = vmatprep.subr.bf16.mxu0 0
    %146 = vmatpush1.bf16.msra.mxu0 %v130
    %147 = vmatprep.subr.bf16.mxu0 0
    %148 = vmatpush1.bf16.msra.mxu0 %v131
    %149 = vmatprep.subr.bf16.mxu0 0
    %150 = vmatpush1.bf16.msra.mxu0 %v132
    %151 = vmatprep.subr.bf16.mxu0 0
    %152 = vmatpush1.bf16.msra.mxu0 %v133
    %153 = vmatprep.subr.bf16.mxu0 0
    %154 = vmatpush1.bf16.msra.mxu0 0
    %155 = vmatprep.subr.bf16.mxu0 0
    %156 = vmatpush1.bf16.msra.mxu0 0
    %157 = vmatprep.subr.bf16.mxu0 0
    %158 = vmatpush1.bf16.msra.mxu0 0
    %159 = vmatprep.subr.bf16.mxu0 0
    %160 = vmatpush1.bf16.msra.mxu0 0
    %161 = vmatprep.subr.bf16.mxu0 0
    %162 = vmatpush1.bf16.msra.mxu0 0
    %163 = vmatprep.subr.bf16.mxu0 0
    %164 = vmatpush1.bf16.msra.mxu0 0
    %165 = vmatprep.subr.bf16.mxu0 0
    %166 = vmatpush1.bf16.msra.mxu0 0
    %167 = vmatprep.subr.bf16.mxu0 0
    %168 = vmatpush1.bf16.msra.mxu0 0
    %169 = vmatprep.subr.bf16.mxu0 0
    %170 = vmatpush1.bf16.msra.mxu0 0
    %171 = vmatprep.subr.bf16.mxu0 0
    %172 = vmatpush1.bf16.msra.mxu0 0
    %173 = vmatprep.subr.bf16.mxu0 0
    %174 = vmatpush1.bf16.msra.mxu0 0
    %175 = vmatprep.subr.bf16.mxu0 0
    %176 = vmatpush1.bf16.msra.mxu0 0
    %177 = vmatprep.mubr.bf16.mxu0 0
    %178 = vmatmul.mubr.bf16.gmra.mrb[0].mxu0 %v140
    %v179 = vpop.f32.mrb[0].mxu0
    %v180 = vadd.f32 0.0, %v179
    %v181 = vpop.f32.mrb[0].mxu0
    %v182 = vpop.f32.mrb[0].mxu0
    %v183 = vadd.f32 0.0, %v182
    %v184 = vpop.f32.mrb[0].mxu0
    %185 = vmatprep.mubr.bf16.mxu0 0
    %186 = vmatmul.mubr.bf16.gmra.mrb[0].mxu0 %v143
    %v187 = vpop.f32.mrb[0].mxu0
    %v188 = vadd.f32 0.0, %v187
    %v189 = vpop.f32.mrb[0].mxu0
    %v190 = vpop.f32.mrb[0].mxu0
    %v191 = vadd.f32 0.0, %v190
    %v192 = vpop.f32.mrb[0].mxu0
    %193 = vdwg.mxu0
    %s194 = scalar_lea.vmem [#allocation5], 32
    %v195 = vld [vmem:[%s194] sm:$0xf]
    %v196 = vld [vmem:[%s194 + $0x4] sm:$0xf]
    %v197 = vld [vmem:[%s194 + $0x8] sm:$0xf]
    %v198 = vld [vmem:[%s194 + $0xc] sm:$0xf]
    %v199 = vld [vmem:[%s194 + $0x10] sm:$0xf]
    %v200 = vld [vmem:[%s194 + $0x14] sm:$0xf]
    %v201 = vld [vmem:[%s194 + $0x18] sm:$0xf]
    %v202 = vld [vmem:[%s194 + $0x1c] sm:$0xf]
    %s203 = scalar_lea.vmem [#allocation5], 64
    %v204 = vld [vmem:[%s203] sm:$0xf]
    %v205 = vld [vmem:[%s203 + $0x4] sm:$0xf]
    %v206 = vld [vmem:[%s203 + $0x8] sm:$0xf]
    %v207 = vld [vmem:[%s203 + $0xc] sm:$0xf]
    %v208 = vld [vmem:[%s203 + $0x10] sm:$0xf]
    %v209 = vld [vmem:[%s203 + $0x14] sm:$0xf]
    %v210 = vld [vmem:[%s203 + $0x18] sm:$0xf]
    %v211 = vld [vmem:[%s203 + $0x1c] sm:$0xf]
    %v220 = vunpack.c.l.b16 %v204
    %v221 = vunpack.c.l.b16 %v205
    %v222 = vunpack.c.l.b16 %v206
    %v223 = vunpack.c.l.b16 %v207
    %v224 = vunpack.c.l.b16 %v208
    %v225 = vunpack.c.l.b16 %v209
    %v226 = vunpack.c.l.b16 %v210
    %v227 = vunpack.c.l.b16 %v211
    %v228 = vpack.c.b16 %v221, %v220
    %v229 = vpack.c.b16 %v223, %v222
    %v230 = vpack.c.b16 %v225, %v224
    %v231 = vpack.c.b16 %v227, %v226
    %236 = vmatprep.subr.bf16.mxu0 0
    %237 = vmatpush1.bf16.msra.mxu0 %v228
    %238 = vmatprep.subr.bf16.mxu0 0
    %239 = vmatpush1.bf16.msra.mxu0 %v229
    %240 = vmatprep.subr.bf16.mxu0 0
    %241 = vmatpush1.bf16.msra.mxu0 %v230
    %242 = vmatprep.subr.bf16.mxu0 0
    %243 = vmatpush1.bf16.msra.mxu0 %v231
    %244 = vmatprep.subr.bf16.mxu0 0
    %245 = vmatpush1.bf16.msra.mxu0 0
    %246 = vmatprep.subr.bf16.mxu0 0
    %247 = vmatpush1.bf16.msra.mxu0 0
    %248 = vmatprep.subr.bf16.mxu0 0
    %249 = vmatpush1.bf16.msra.mxu0 0
    %250 = vmatprep.subr.bf16.mxu0 0
    %251 = vmatpush1.bf16.msra.mxu0 0
    %252 = vmatprep.subr.bf16.mxu0 0
    %253 = vmatpush1.bf16.msra.mxu0 0
    %254 = vmatprep.subr.bf16.mxu0 0
    %255 = vmatpush1.bf16.msra.mxu0 0
    %256 = vmatprep.subr.bf16.mxu0 0
    %257 = vmatpush1.bf16.msra.mxu0 0
    %258 = vmatprep.subr.bf16.mxu0 0
    %259 = vmatpush1.bf16.msra.mxu0 0
    %260 = vmatprep.subr.bf16.mxu0 0
    %261 = vmatpush1.bf16.msra.mxu0 0
    %262 = vmatprep.subr.bf16.mxu0 0
    %263 = vmatpush1.bf16.msra.mxu0 0
    %264 = vmatprep.subr.bf16.mxu0 0
    %265 = vmatpush1.bf16.msra.mxu0 0
    %266 = vmatprep.subr.bf16.mxu0 0
    %267 = vmatpush1.bf16.msra.mxu0 0
    %268 = vmatprep.mubr.bf16.mxu0 0
    %269 = vmatmul.mubr.bf16.gmra.mrb[0].mxu0 %v140
    %v270 = vpop.f32.mrb[0].mxu0
    %v271 = vadd.f32 0.0, %v270
    %v272 = vpop.f32.mrb[0].mxu0
    %v273 = vpop.f32.mrb[0].mxu0
    %v274 = vadd.f32 0.0, %v273
    %v275 = vpop.f32.mrb[0].mxu0
    %276 = vmatprep.mubr.bf16.mxu0 0
    %277 = vmatmul.mubr.bf16.gmra.mrb[0].mxu0 %v143
    %v278 = vpop.f32.mrb[0].mxu0
    %v279 = vadd.f32 0.0, %v278
    %v280 = vpop.f32.mrb[0].mxu0
    %v281 = vpop.f32.mrb[0].mxu0
    %v282 = vadd.f32 0.0, %v281
    %v283 = vpop.f32.mrb[0].mxu0
    %284 = vdwg.mxu0
    %v285 = vrot.slane %v180, 7
    %v286 = vrot.slane %v183, 7
    %v287 = vrot.slane %v188, 7
    %v288 = vrot.slane %v191, 7
    %vm289 = vcmp.lt.s32.totalorder %v84, 1
    %v290 = vsel %vm289, %v287, %v288
    %v291 = vsel %vm289, %v286, %v287
    %v292 = vsel %vm289, %v285, %v286
    %v293 = vsel %vm289, %v288, %v285
    %v294 = vsel %vm92, 1, 0
    %v295 = vsel %vm93, 1, 0
    %v296 = vsel %vm94, 1, 0
    %v297 = vsel %vm95, 1, 0
    %vm298 = vcmp.eq.s32.totalorder %v294, 1
    %vm299 = vcmp.eq.s32.totalorder %v295, 1
    %vm300 = vcmp.eq.s32.totalorder %v296, 1
    %vm301 = vcmp.eq.s32.totalorder %v297, 1
    %v302 = vsel %vm298, 0.0, %v293
    %v303 = vsel %vm299, 0.0, %v292
    %v304 = vsel %vm300, 0.0, %v291
    %v305 = vsel %vm301, 0.0, %v290
    %v314 = vunpack.c.l.b16 %v195
    %v315 = vunpack.c.l.b16 %v196
    %v316 = vunpack.c.l.b16 %v197
    %v317 = vunpack.c.l.b16 %v198
    %v318 = vunpack.c.l.b16 %v199
    %v319 = vunpack.c.l.b16 %v200
    %v320 = vunpack.c.l.b16 %v201
    %v321 = vunpack.c.l.b16 %v202
    %v322 = vpack.c.b16 %v315, %v314
    %v323 = vpack.c.b16 %v317, %v316
    %v324 = vpack.c.b16 %v319, %v318
    %v325 = vpack.c.b16 %v321, %v320
    %330 = vmatprep.subr.bf16.mxu0 0
    %331 = vmatpush1.bf16.msra.mxu0 %v322
    %332 = vmatprep.subr.bf16.mxu0 0
    %333 = vmatpush1.bf16.msra.mxu0 %v323
    %334 = vmatprep.subr.bf16.mxu0 0
    %335 = vmatpush1.bf16.msra.mxu0 %v324
    %336 = vmatprep.subr.bf16.mxu0 0
    %337 = vmatpush1.bf16.msra.mxu0 %v325
    %338 = vmatprep.subr.bf16.mxu0 0
    %339 = vmatpush1.bf16.msra.mxu0 0
    %340 = vmatprep.subr.bf16.mxu0 0
    %341 = vmatpush1.bf16.msra.mxu0 0
    %342 = vmatprep.subr.bf16.mxu0 0
    %343 = vmatpush1.bf16.msra.mxu0 0
    %344 = vmatprep.subr.bf16.mxu0 0
    %345 = vmatpush1.bf16.msra.mxu0 0
    %346 = vmatprep.subr.bf16.mxu0 0
    %347 = vmatpush1.bf16.msra.mxu0 0
    %348 = vmatprep.subr.bf16.mxu0 0
    %349 = vmatpush1.bf16.msra.mxu0 0
    %350 = vmatprep.subr.bf16.mxu0 0
    %351 = vmatpush1.bf16.msra.mxu0 0
    %352 = vmatprep.subr.bf16.mxu0 0
    %353 = vmatpush1.bf16.msra.mxu0 0
    %354 = vmatprep.subr.bf16.mxu0 0
    %355 = vmatpush1.bf16.msra.mxu0 0
    %356 = vmatprep.subr.bf16.mxu0 0
    %357 = vmatpush1.bf16.msra.mxu0 0
    %358 = vmatprep.subr.bf16.mxu0 0
    %359 = vmatpush1.bf16.msra.mxu0 0
    %360 = vmatprep.subr.bf16.mxu0 0
    %361 = vmatpush1.bf16.msra.mxu0 0
    %362 = vmatprep.mubr.bf16.mxu0 0
    %363 = vmatmul.mubr.bf16.gmra.mrb[0].mxu0 %v140
    %v364 = vpop.f32.mrb[0].mxu0
    %v365 = vadd.f32 %v302, %v364
    %v366 = vpop.f32.mrb[0].mxu0
    %v367 = vpop.f32.mrb[0].mxu0
    %v368 = vadd.f32 %v303, %v367
    %v369 = vpop.f32.mrb[0].mxu0
    %370 = vmatprep.mubr.bf16.mxu0 0
    %371 = vmatmul.mubr.bf16.gmra.mrb[0].mxu0 %v143
    %v372 = vpop.f32.mrb[0].mxu0
    %v373 = vadd.f32 %v304, %v372
    %v374 = vpop.f32.mrb[0].mxu0
    %v375 = vpop.f32.mrb[0].mxu0
    %v376 = vadd.f32 %v305, %v375
    %v377 = vpop.f32.mrb[0].mxu0
    %378 = vdwg.mxu0
    %v379 = vrot.slane %v271, 1
    %v380 = vrot.slane %v274, 1
    %v381 = vrot.slane %v279, 1
    %v382 = vrot.slane %v282, 1
    %vm383 = vcmp.lt.s32.totalorder %v84, 7
    %v384 = vsel %vm383, %v381, %v382
    %v385 = vsel %vm383, %v380, %v381
    %v386 = vsel %vm383, %v379, %v380
    %v387 = vsel %vm383, %v382, %v379
    %v388 = vsel %vm96, 1, 0
    %v389 = vsel %vm97, 1, 0
    %v390 = vsel %vm98, 1, 0
    %v391 = vsel %vm99, 1, 0
    %vm392 = vcmp.eq.s32.totalorder %v388, 1
    %vm393 = vcmp.eq.s32.totalorder %v389, 1
    %vm394 = vcmp.eq.s32.totalorder %v390, 1
    %vm395 = vcmp.eq.s32.totalorder %v391, 1
    %v396 = vsel %vm392, 0.0, %v386
    %v397 = vsel %vm393, 0.0, %v385
    %v398 = vsel %vm394, 0.0, %v384
    %v399 = vsel %vm395, 0.0, %v387
    %v400 = vadd.f32 %v365, %v396
    %v401 = vadd.f32 %v368, %v397
    %v402 = vadd.f32 %v373, %v398
    %v403 = vadd.f32 %v376, %v399
    %v404 = vld [vmem:[%s4] sm:$0x1]
    %v406 = vlaneseq
    %v407 = vshrl.u32 %v406, 7
    %v408 = vsub.s32 0, %v407
    %v409 = vrot.slane %v404, %v408
    %v411 = vadd.f32 %v400, %v409
    %v412 = vadd.f32 %v401, %v409
    %v413 = vadd.f32 %v402, %v409
    %v414 = vadd.f32 %v403, %v409
    %v415 = vmax.f32 %v411, 0.0
    %v416 = vmax.f32 %v412, 0.0
    %v417 = vmax.f32 %v413, 0.0
    %v418 = vmax.f32 %v414, 0.0
    %v419 = vpack.c.bf16 %v416, %v415
    %v420 = vpack.c.bf16 %v418, %v417
    %v421 = vld [vmem:[#allocation7] sm:$0xf]
    %v422 = vld [vmem:[#allocation7 + $0x4] sm:$0xf]
    %v423 = vld [vmem:[#allocation7 + $0x8] sm:$0xf]
    %v424 = vld [vmem:[#allocation7 + $0xc] sm:$0xf]
    %v425 = vld [vmem:[#allocation7 + $0x10] sm:$0xf]
    %v426 = vld [vmem:[#allocation7 + $0x14] sm:$0xf]
    %v427 = vld [vmem:[#allocation7 + $0x18] sm:$0xf]
    %v428 = vld [vmem:[#allocation7 + $0x1c] sm:$0xf]
    %v429 = vld [vmem:[#allocation7 + $0x20] sm:$0xf]
    %v430 = vld [vmem:[#allocation7 + $0x24] sm:$0xf]
    %v431 = vld [vmem:[#allocation7 + $0x28] sm:$0xf]
    %v432 = vld [vmem:[#allocation7 + $0x2c] sm:$0xf]
    %v433 = vld [vmem:[#allocation7 + $0x30] sm:$0xf]
    %v434 = vld [vmem:[#allocation7 + $0x34] sm:$0xf]
    %v435 = vld [vmem:[#allocation7 + $0x38] sm:$0xf]
    %v436 = vld [vmem:[#allocation7 + $0x3c] sm:$0xf]
    %v453 = vunpack.c.l.b16 %v421
    %v454 = vunpack.c.l.b16 %v422
    %v455 = vunpack.c.l.b16 %v423
    %v456 = vunpack.c.l.b16 %v424
    %v457 = vunpack.c.l.b16 %v425
    %v458 = vunpack.c.l.b16 %v426
    %v459 = vunpack.c.l.b16 %v427
    %v460 = vunpack.c.l.b16 %v428
    %v461 = vunpack.c.l.b16 %v429
    %v462 = vunpack.c.l.b16 %v430
    %v463 = vunpack.c.l.b16 %v431
    %v464 = vunpack.c.l.b16 %v432
    %v465 = vunpack.c.l.b16 %v433
    %v466 = vunpack.c.l.b16 %v434
    %v467 = vunpack.c.l.b16 %v435
    %v468 = vunpack.c.l.b16 %v436
    %v469 = vpack.c.b16 %v454, %v453
    %v470 = vpack.c.b16 %v456, %v455
    %v471 = vpack.c.b16 %v458, %v457
    %v472 = vpack.c.b16 %v460, %v459
    %v473 = vpack.c.b16 %v462, %v461
    %v474 = vpack.c.b16 %v464, %v463
    %v475 = vpack.c.b16 %v466, %v465
    %v476 = vpack.c.b16 %v468, %v467
    %485 = vmatprep.subr.bf16.mxu0 0
    %486 = vmatpush1.bf16.msra.mxu0 %v469
    %487 = vmatprep.subr.bf16.mxu0 0
    %488 = vmatpush1.bf16.msra.mxu0 %v470
    %489 = vmatprep.subr.bf16.mxu0 0
    %490 = vmatpush1.bf16.msra.mxu0 %v471
    %491 = vmatprep.subr.bf16.mxu0 0
    %492 = vmatpush1.bf16.msra.mxu0 %v472
    %493 = vmatprep.subr.bf16.mxu0 0
    %494 = vmatpush1.bf16.msra.mxu0 %v473
    %495 = vmatprep.subr.bf16.mxu0 0
    %496 = vmatpush1.bf16.msra.mxu0 %v474
    %497 = vmatprep.subr.bf16.mxu0 0
    %498 = vmatpush1.bf16.msra.mxu0 %v475
    %499 = vmatprep.subr.bf16.mxu0 0
    %500 = vmatpush1.bf16.msra.mxu0 %v476
    %501 = vmatprep.subr.bf16.mxu0 0
    %502 = vmatpush1.bf16.msra.mxu0 0
    %503 = vmatprep.subr.bf16.mxu0 0
    %504 = vmatpush1.bf16.msra.mxu0 0
    %505 = vmatprep.subr.bf16.mxu0 0
    %506 = vmatpush1.bf16.msra.mxu0 0
    %507 = vmatprep.subr.bf16.mxu0 0
    %508 = vmatpush1.bf16.msra.mxu0 0
    %509 = vmatprep.subr.bf16.mxu0 0
    %510 = vmatpush1.bf16.msra.mxu0 0
    %511 = vmatprep.subr.bf16.mxu0 0
    %512 = vmatpush1.bf16.msra.mxu0 0
    %513 = vmatprep.subr.bf16.mxu0 0
    %514 = vmatpush1.bf16.msra.mxu0 0
    %515 = vmatprep.subr.bf16.mxu0 0
    %516 = vmatpush1.bf16.msra.mxu0 0
    %517 = vmatprep.mubr.bf16.mxu0 0
    %518 = vmatmul.mubr.bf16.gmra.mrb[0].mxu0 %v419
    %v519 = vpop.f32.mrb[0].mxu0
    %v520 = vadd.f32 0.0, %v519
    %v521 = vpop.f32.mrb[0].mxu0
    %v522 = vpop.f32.mrb[0].mxu0
    %v523 = vadd.f32 0.0, %v522
    %v524 = vpop.f32.mrb[0].mxu0
    %525 = vmatprep.mubr.bf16.mxu0 0
    %526 = vmatmul.mubr.bf16.gmra.mrb[0].mxu0 %v420
    %v527 = vpop.f32.mrb[0].mxu0
    %v528 = vadd.f32 0.0, %v527
    %v529 = vpop.f32.mrb[0].mxu0
    %v530 = vpop.f32.mrb[0].mxu0
    %v531 = vadd.f32 0.0, %v530
    %v532 = vpop.f32.mrb[0].mxu0
    %533 = vdwg.mxu0
    %s534 = scalar_lea.vmem [#allocation7], 64
    %v535 = vld [vmem:[%s534] sm:$0xf]
    %v536 = vld [vmem:[%s534 + $0x4] sm:$0xf]
    %v537 = vld [vmem:[%s534 + $0x8] sm:$0xf]
    %v538 = vld [vmem:[%s534 + $0xc] sm:$0xf]
    %v539 = vld [vmem:[%s534 + $0x10] sm:$0xf]
    %v540 = vld [vmem:[%s534 + $0x14] sm:$0xf]
    %v541 = vld [vmem:[%s534 + $0x18] sm:$0xf]
    %v542 = vld [vmem:[%s534 + $0x1c] sm:$0xf]
    %v543 = vld [vmem:[%s534 + $0x20] sm:$0xf]
    %v544 = vld [vmem:[%s534 + $0x24] sm:$0xf]
    %v545 = vld [vmem:[%s534 + $0x28] sm:$0xf]
    %v546 = vld [vmem:[%s534 + $0x2c] sm:$0xf]
    %v547 = vld [vmem:[%s534 + $0x30] sm:$0xf]
    %v548 = vld [vmem:[%s534 + $0x34] sm:$0xf]
    %v549 = vld [vmem:[%s534 + $0x38] sm:$0xf]
    %v550 = vld [vmem:[%s534 + $0x3c] sm:$0xf]
    %s551 = scalar_lea.vmem [#allocation7], 128
    %v552 = vld [vmem:[%s551] sm:$0xf]
    %v553 = vld [vmem:[%s551 + $0x4] sm:$0xf]
    %v554 = vld [vmem:[%s551 + $0x8] sm:$0xf]
    %v555 = vld [vmem:[%s551 + $0xc] sm:$0xf]
    %v556 = vld [vmem:[%s551 + $0x10] sm:$0xf]
    %v557 = vld [vmem:[%s551 + $0x14] sm:$0xf]
    %v558 = vld [vmem:[%s551 + $0x18] sm:$0xf]
    %v559 = vld [vmem:[%s551 + $0x1c] sm:$0xf]
    %v560 = vld [vmem:[%s551 + $0x20] sm:$0xf]
    %v561 = vld [vmem:[%s551 + $0x24] sm:$0xf]
    %v562 = vld [vmem:[%s551 + $0x28] sm:$0xf]
    %v563 = vld [vmem:[%s551 + $0x2c] sm:$0xf]
    %v564 = vld [vmem:[%s551 + $0x30] sm:$0xf]
    %v565 = vld [vmem:[%s551 + $0x34] sm:$0xf]
    %v566 = vld [vmem:[%s551 + $0x38] sm:$0xf]
    %v567 = vld [vmem:[%s551 + $0x3c] sm:$0xf]
    %v584 = vunpack.c.l.b16 %v552
    %v585 = vunpack.c.l.b16 %v553
    %v586 = vunpack.c.l.b16 %v554
    %v587 = vunpack.c.l.b16 %v555
    %v588 = vunpack.c.l.b16 %v556
    %v589 = vunpack.c.l.b16 %v557
    %v590 = vunpack.c.l.b16 %v558
    %v591 = vunpack.c.l.b16 %v559
    %v592 = vunpack.c.l.b16 %v560
    %v593 = vunpack.c.l.b16 %v561
    %v594 = vunpack.c.l.b16 %v562
    %v595 = vunpack.c.l.b16 %v563
    %v596 = vunpack.c.l.b16 %v564
    %v597 = vunpack.c.l.b16 %v565
    %v598 = vunpack.c.l.b16 %v566
    %v599 = vunpack.c.l.b16 %v567
    %v600 = vpack.c.b16 %v585, %v584
    %v601 = vpack.c.b16 %v587, %v586
    %v602 = vpack.c.b16 %v589, %v588
    %v603 = vpack.c.b16 %v591, %v590
    %v604 = vpack.c.b16 %v593, %v592
    %v605 = vpack.c.b16 %v595, %v594
    %v606 = vpack.c.b16 %v597, %v596
    %v607 = vpack.c.b16 %v599, %v598
    %616 = vmatprep.subr.bf16.mxu0 0
    %617 = vmatpush1.bf16.msra.mxu0 %v600
    %618 = vmatprep.subr.bf16.mxu0 0
    %619 = vmatpush1.bf16.msra.mxu0 %v601
    %620 = vmatprep.subr.bf16.mxu0 0
    %621 = vmatpush1.bf16.msra.mxu0 %v602
    %622 = vmatprep.subr.bf16.mxu0 0
    %623 = vmatpush1.bf16.msra.mxu0 %v603
    %624 = vmatprep.subr.bf16.mxu0 0
    %625 = vmatpush1.bf16.msra.mxu0 %v604
    %626 = vmatprep.subr.bf16.mxu0 0
    %627 = vmatpush1.bf16.msra.mxu0 %v605
    %628 = vmatprep.subr.bf16.mxu0 0
    %629 = vmatpush1.bf16.msra.mxu0 %v606
    %630 = vmatprep.subr.bf16.mxu0 0
    %631 = vmatpush1.bf16.msra.mxu0 %v607
    %632 = vmatprep.subr.bf16.mxu0 0
    %633 = vmatpush1.bf16.msra.mxu0 0
    %634 = vmatprep.subr.bf16.mxu0 0
    %635 = vmatpush1.bf16.msra.mxu0 0
    %636 = vmatprep.subr.bf16.mxu0 0
    %637 = vmatpush1.bf16.msra.mxu0 0
    %638 = vmatprep.subr.bf16.mxu0 0
    %639 = vmatpush1.bf16.msra.mxu0 0
    %640 = vmatprep.subr.bf16.mxu0 0
    %641 = vmatpush1.bf16.msra.mxu0 0
    %642 = vmatprep.subr.bf16.mxu0 0
    %643 = vmatpush1.bf16.msra.mxu0 0
    %644 = vmatprep.subr.bf16.mxu0 0
    %645 = vmatpush1.bf16.msra.mxu0 0
    %646 = vmatprep.subr.bf16.mxu0 0
    %647 = vmatpush1.bf16.msra.mxu0 0
    %648 = vmatprep.mubr.bf16.mxu0 0
    %649 = vmatmul.mubr.bf16.gmra.mrb[0].mxu0 %v419
    %v650 = vpop.f32.mrb[0].mxu0
    %v651 = vadd.f32 0.0, %v650
    %v652 = vpop.f32.mrb[0].mxu0
    %v653 = vpop.f32.mrb[0].mxu0
    %v654 = vadd.f32 0.0, %v653
    %v655 = vpop.f32.mrb[0].mxu0
    %656 = vmatprep.mubr.bf16.mxu0 0
    %657 = vmatmul.mubr.bf16.gmra.mrb[0].mxu0 %v420
    %v658 = vpop.f32.mrb[0].mxu0
    %v659 = vadd.f32 0.0, %v658
    %v660 = vpop.f32.mrb[0].mxu0
    %v661 = vpop.f32.mrb[0].mxu0
    %v662 = vadd.f32 0.0, %v661
    %v663 = vpop.f32.mrb[0].mxu0
    %664 = vdwg.mxu0
    %v665 = vrot.slane %v520, 7
    %v666 = vrot.slane %v523, 7
    %v667 = vrot.slane %v528, 7
    %v668 = vrot.slane %v531, 7
    %v669 = vsel %vm289, %v667, %v668
    %v670 = vsel %vm289, %v666, %v667
    %v671 = vsel %vm289, %v665, %v666
    %v672 = vsel %vm289, %v668, %v665
    %v673 = vsel %vm298, 0.0, %v672
    %v674 = vsel %vm299, 0.0, %v671
    %v675 = vsel %vm300, 0.0, %v670
    %v676 = vsel %vm301, 0.0, %v669
    %v693 = vunpack.c.l.b16 %v535
    %v694 = vunpack.c.l.b16 %v536
    %v695 = vunpack.c.l.b16 %v537
    %v696 = vunpack.c.l.b16 %v538
    %v697 = vunpack.c.l.b16 %v539
    %v698 = vunpack.c.l.b16 %v540
    %v699 = vunpack.c.l.b16 %v541
    %v700 = vunpack.c.l.b16 %v542
    %v701 = vunpack.c.l.b16 %v543
    %v702 = vunpack.c.l.b16 %v544
    %v703 = vunpack.c.l.b16 %v545
    %v704 = vunpack.c.l.b16 %v546
    %v705 = vunpack.c.l.b16 %v547
    %v706 = vunpack.c.l.b16 %v548
    %v707 = vunpack.c.l.b16 %v549
    %v708 = vunpack.c.l.b16 %v550
    %v709 = vpack.c.b16 %v694, %v693
    %v710 = vpack.c.b16 %v696, %v695
    %v711 = vpack.c.b16 %v698, %v697
    %v712 = vpack.c.b16 %v700, %v699
    %v713 = vpack.c.b16 %v702, %v701
    %v714 = vpack.c.b16 %v704, %v703
    %v715 = vpack.c.b16 %v706, %v705
    %v716 = vpack.c.b16 %v708, %v707
    %725 = vmatprep.subr.bf16.mxu0 0
    %726 = vmatpush1.bf16.msra.mxu0 %v709
    %727 = vmatprep.subr.bf16.mxu0 0
    %728 = vmatpush1.bf16.msra.mxu0 %v710
    %729 = vmatprep.subr.bf16.mxu0 0
    %730 = vmatpush1.bf16.msra.mxu0 %v711
    %731 = vmatprep.subr.bf16.mxu0 0
    %732 = vmatpush1.bf16.msra.mxu0 %v712
    %733 = vmatprep.subr.bf16.mxu0 0
    %734 = vmatpush1.bf16.msra.mxu0 %v713
    %735 = vmatprep.subr.bf16.mxu0 0
    %736 = vmatpush1.bf16.msra.mxu0 %v714
    %737 = vmatprep.subr.bf16.mxu0 0
    %738 = vmatpush1.bf16.msra.mxu0 %v715
    %739 = vmatprep.subr.bf16.mxu0 0
    %740 = vmatpush1.bf16.msra.mxu0 %v716
    %741 = vmatprep.subr.bf16.mxu0 0
    %742 = vmatpush1.bf16.msra.mxu0 0
    %743 = vmatprep.subr.bf16.mxu0 0
    %744 = vmatpush1.bf16.msra.mxu0 0
    %745 = vmatprep.subr.bf16.mxu0 0
    %746 = vmatpush1.bf16.msra.mxu0 0
    %747 = vmatprep.subr.bf16.mxu0 0
    %748 = vmatpush1.bf16.msra.mxu0 0
    %749 = vmatprep.subr.bf16.mxu0 0
    %750 = vmatpush1.bf16.msra.mxu0 0
    %751 = vmatprep.subr.bf16.mxu0 0
    %752 = vmatpush1.bf16.msra.mxu0 0
    %753 = vmatprep.subr.bf16.mxu0 0
    %754 = vmatpush1.bf16.msra.mxu0 0
    %755 = vmatprep.subr.bf16.mxu0 0
    %756 = vmatpush1.bf16.msra.mxu0 0
    %757 = vmatprep.mubr.bf16.mxu0 0
    %758 = vmatmul.mubr.bf16.gmra.mrb[0].mxu0 %v419
    %v759 = vpop.f32.mrb[0].mxu0
    %v760 = vadd.f32 %v673, %v759
    %v761 = vpop.f32.mrb[0].mxu0
    %v762 = vpop.f32.mrb[0].mxu0
    %v763 = vadd.f32 %v674, %v762
    %v764 = vpop.f32.mrb[0].mxu0
    %765 = vmatprep.mubr.bf16.mxu0 0
    %766 = vmatmul.mubr.bf16.gmra.mrb[0].mxu0 %v420
    %v767 = vpop.f32.mrb[0].mxu0
    %v768 = vadd.f32 %v675, %v767
    %v769 = vpop.f32.mrb[0].mxu0
    %v770 = vpop.f32.mrb[0].mxu0
    %v771 = vadd.f32 %v676, %v770
    %v772 = vpop.f32.mrb[0].mxu0
    %773 = vdwg.mxu0
    %v774 = vrot.slane %v651, 1
    %v775 = vrot.slane %v654, 1
    %v776 = vrot.slane %v659, 1
    %v777 = vrot.slane %v662, 1
    %v778 = vsel %vm383, %v776, %v777
    %v779 = vsel %vm383, %v775, %v776
    %v780 = vsel %vm383, %v774, %v775
    %v781 = vsel %vm383, %v777, %v774
    %v782 = vsel %vm392, 0.0, %v780
    %v783 = vsel %vm393, 0.0, %v779
    %v784 = vsel %vm394, 0.0, %v778
    %v785 = vsel %vm395, 0.0, %v781
    %v786 = vadd.f32 %v760, %v782
    %v787 = vadd.f32 %v763, %v783
    %v788 = vadd.f32 %v768, %v784
    %v789 = vadd.f32 %v771, %v785
    %v790 = vld [vmem:[%s5] sm:$0x1]
    %v792 = vlaneseq
    %v793 = vshrl.u32 %v792, 7
    %v794 = vsub.s32 0, %v793
    %v795 = vrot.slane %v790, %v794
    %v797 = vadd.f32 %v786, %v795
    %v798 = vadd.f32 %v787, %v795
    %v799 = vadd.f32 %v788, %v795
    %v800 = vadd.f32 %v789, %v795
    %v801 = vld [vmem:[#allocation8] sm:$0xf]
    %v802 = vld [vmem:[#allocation8 + $0x4] sm:$0xf]
    %v803 = vld [vmem:[#allocation8 + $0x8] sm:$0xf]
    %v804 = vld [vmem:[#allocation8 + $0xc] sm:$0xf]
    %v805 = vld [vmem:[#allocation8 + $0x10] sm:$0xf]
    %v806 = vld [vmem:[#allocation8 + $0x14] sm:$0xf]
    %v807 = vld [vmem:[#allocation8 + $0x18] sm:$0xf]
    %v808 = vld [vmem:[#allocation8 + $0x1c] sm:$0xf]
    %v809 = vld [vmem:[%s6] sm:$0x1]
    %v811 = vlaneseq
    %v812 = vshrl.u32 %v811, 7
    %v813 = vsub.s32 0, %v812
    %v814 = vrot.slane %v809, %v813
    %v824 = vunpack.c.l.b16 %v801
    %v825 = vunpack.c.l.b16 %v802
    %v826 = vunpack.c.l.b16 %v803
    %v827 = vunpack.c.l.b16 %v804
    %v828 = vunpack.c.l.b16 %v805
    %v829 = vunpack.c.l.b16 %v806
    %v830 = vunpack.c.l.b16 %v807
    %v831 = vunpack.c.l.b16 %v808
    %v832 = vpack.c.b16 %v825, %v824
    %v833 = vpack.c.b16 %v827, %v826
    %v834 = vpack.c.b16 %v829, %v828
    %v835 = vpack.c.b16 %v831, %v830
    %840 = vmatprep.subr.bf16.mxu0 0
    %841 = vmatpush1.bf16.msra.mxu0 %v832
    %842 = vmatprep.subr.bf16.mxu0 0
    %843 = vmatpush1.bf16.msra.mxu0 %v833
    %844 = vmatprep.subr.bf16.mxu0 0
    %845 = vmatpush1.bf16.msra.mxu0 %v834
    %846 = vmatprep.subr.bf16.mxu0 0
    %847 = vmatpush1.bf16.msra.mxu0 %v835
    %848 = vmatprep.subr.bf16.mxu0 0
    %849 = vmatpush1.bf16.msra.mxu0 0
    %850 = vmatprep.subr.bf16.mxu0 0
    %851 = vmatpush1.bf16.msra.mxu0 0
    %852 = vmatprep.subr.bf16.mxu0 0
    %853 = vmatpush1.bf16.msra.mxu0 0
    %854 = vmatprep.subr.bf16.mxu0 0
    %855 = vmatpush1.bf16.msra.mxu0 0
    %856 = vmatprep.subr.bf16.mxu0 0
    %857 = vmatpush1.bf16.msra.mxu0 0
    %858 = vmatprep.subr.bf16.mxu0 0
    %859 = vmatpush1.bf16.msra.mxu0 0
    %860 = vmatprep.subr.bf16.mxu0 0
    %861 = vmatpush1.bf16.msra.mxu0 0
    %862 = vmatprep.subr.bf16.mxu0 0
    %863 = vmatpush1.bf16.msra.mxu0 0
    %864 = vmatprep.subr.bf16.mxu0 0
    %865 = vmatpush1.bf16.msra.mxu0 0
    %866 = vmatprep.subr.bf16.mxu0 0
    %867 = vmatpush1.bf16.msra.mxu0 0
    %868 = vmatprep.subr.bf16.mxu0 0
    %869 = vmatpush1.bf16.msra.mxu0 0
    %870 = vmatprep.subr.bf16.mxu0 0
    %871 = vmatpush1.bf16.msra.mxu0 0
    %872 = vmatprep.mubr.bf16.mxu0 0
    %873 = vmatmul.mubr.bf16.gmra.mrb[0].mxu0 %v140
    %v874 = vpop.f32.mrb[0].mxu0
    %v875 = vadd.f32 %v814, %v874
    %v876 = vpop.f32.mrb[0].mxu0
    %v877 = vpop.f32.mrb[0].mxu0
    %v878 = vadd.f32 %v814, %v877
    %v879 = vpop.f32.mrb[0].mxu0
    %880 = vmatprep.mubr.bf16.mxu0 0
    %881 = vmatmul.mubr.bf16.gmra.mrb[0].mxu0 %v143
    %v882 = vpop.f32.mrb[0].mxu0
    %v883 = vadd.f32 %v814, %v882
    %v884 = vpop.f32.mrb[0].mxu0
    %v885 = vpop.f32.mrb[0].mxu0
    %v886 = vadd.f32 %v814, %v885
    %v887 = vpop.f32.mrb[0].mxu0
    %888 = vdwg.mxu0
    %v889 = vadd.f32 %v797, %v875
    %v890 = vadd.f32 %v798, %v878
    %v891 = vadd.f32 %v799, %v883
    %v892 = vadd.f32 %v800, %v886
    %v893 = vmax.f32 %v889, 0.0
    %v894 = vmax.f32 %v890, 0.0
    %v895 = vmax.f32 %v891, 0.0
    %v896 = vmax.f32 %v892, 0.0
    %897 = vst [vmem:[#allocation10] sm:$0xff] %v893
    %898 = vst [vmem:[#allocation10 + $0x8] sm:$0xff] %v894
    %899 = vst [vmem:[#allocation10 + $0x10] sm:$0xff] %v895
    %900 = vst [vmem:[#allocation10 + $0x18] sm:$0xff] %v896
    // Predicated region
    $region46: #{tpu_custom_call.1} parent=1 // pred_check
      _
    $region47: #{tpu_custom_call.1} parent=1 // pred_check_branch
      %902 = sbr.rel (0) target = $region49
    $region48: #{tpu_custom_call.1} parent=1 // pred_region
      %s904 = ssub.s32 512, 512
      %905 = vsyncadd [#allocation4], %s904
      %s906 = sshll.u32 [#allocation10], 4
      %s907 = int_to_ptr.vmem [resolvable:$true] %s906
      %912 = dma.vmem_to_hbm [thread:$0]  %s907, 512, %s7, [#allocation4], 128, 128, 8
    $region49: #{tpu_custom_call.1} parent=1 // pred_fallthru
      _
    // Predicated region
    $region50: #{tpu_custom_call.1} parent=1 // pred_check
      _
    $region51: #{tpu_custom_call.1} parent=1 // pred_check_branch
      %914 = sbr.rel (0) target = $region53
    $region52: #{tpu_custom_call.1} parent=1 // pred_region
      %915 = dma.done [#allocation4], 512
    $region53: #{tpu_custom_call.1} parent=1 // pred_fallthru
      _
    %916 = vsyncpa [#allocation3], 1
    %917 = vsyncpa [#allocation6], 1
    %918 = vsyncpa [#allocation9], 1
    %919 = vsyncpa [#allocation4], 1

</llo_original>
